<compile_context>
chip_gen: v7x
topology: tpu7x:2x2x1
jax: 0.10.0
libtpu: 0.0.40
codegen_flags: <defaults>
</compile_context>

<pallas_src>
import math
import jax
import jax.numpy as jnp
from jax.experimental import pallas as pl
from jax.experimental.pallas import tpu as pltpu


# ----------------------------- Pallas kernel -------------------------------

def _linear_kernel(x_ref, wt_ref, b_ref, o_ref):
    """One (tm, tn) output tile; accumulates x_tile @ wT_tile over the K grid axis.

    x_ref : (tm, tk)   input tile
    wt_ref: (tk, tn)   pre-transposed weight tile (native MXU RHS layout)
    b_ref : (1,  tn)   bias tile (resident across K)
    o_ref : (tm, tn)   output tile, VMEM-resident across the K axis (accumulator)
    """
    k = pl.program_id(2)

    @pl.when(k == 0)
    def _():
        # Initialize the accumulator with the bias (added exactly once).
        o_ref[...] = jnp.broadcast_to(b_ref[...], o_ref.shape).astype(o_ref.dtype)

    o_ref[...] += jnp.dot(
        x_ref[...], wt_ref[...], preferred_element_type=jnp.float32
    )


def _pick_tile(dim, align, target):
    """Largest multiple of `align` <= target that evenly divides dim, else dim."""
    if dim <= target:
        return dim
    t = (target // align) * align
    while t >= align:
        if dim % t == 0:
            return t
        t -= align
    return dim


def cutlass_linear_fp32(x, weight, bias):
    """y = x @ weight.T + bias, then view(1, -1) like CutlassLinear.forward.

    x:      (M, K_in)  float32, K_in <= K_pad (weight's second dim)
    weight: (N, K_pad) float32   (out_features, padded in_features)
    bias:   (N,)       float32
    returns (1, M*N)   float32
    """
    M, K_in = x.shape
    N, K_pad = weight.shape
    assert K_in <= K_pad

    # Only iterate over the "real" K range: columns of x beyond K_in are zero,
    # so weight columns beyond K_eff contribute nothing.  Round up to a lane
    # multiple (128) for the MXU / DMA tiling.
    K_eff = min(K_pad, ((K_in + 127) // 128) * 128)

    # Tile sizes (fall back to full dims for small shapes; satisfies the
    # (8, 128) block constraint since full-extent blocks are always legal).
    tm = _pick_tile(M, 8, 256)
    tn = _pick_tile(N, 128, 512)
    tk = _pick_tile(K_eff, 128, 512)

    # Pad x up to K_eff (zero columns -> zero contribution).
    if K_in < K_eff:
        x = jnp.pad(x, ((0, 0), (0, K_eff - K_in)))

    # Pre-transpose (and trim) the weight so the kernel RHS is (K, N):
    # native MXU feed layout, no per-tile XLU transpose inside the kernel.
    wT = jnp.transpose(weight[:, :K_eff])          # (K_eff, N)
    b2d = bias.reshape(1, N).astype(jnp.float32)   # (1, N)

    grid = (M // tm, N // tn, K_eff // tk)

    y = pl.pallas_call(
        _linear_kernel,
        out_shape=jax.ShapeDtypeStruct((M, N), jnp.float32),
        grid_spec=pltpu.PrefetchScalarGridSpec(
            num_scalar_prefetch=0,
            grid=grid,
            in_specs=[
                pl.BlockSpec((tm, tk), lambda i, j, k: (i, k)),  # x tile
                pl.BlockSpec((tk, tn), lambda i, j, k: (k, j)),  # W^T tile
                pl.BlockSpec((1, tn), lambda i, j, k: (0, j)),   # bias tile
            ],
            out_specs=pl.BlockSpec((tm, tn), lambda i, j, k: (i, j)),
        ),
        compiler_params=pltpu.CompilerParams(
            dimension_semantics=("parallel", "parallel", "arbitrary"),
        ),
    )(x, wT, b2d)

    # forward() returns self.output.view(1, -1)
    return y.reshape(1, -1)


# ------------------------- parameter initialization ------------------------

def init_cutlass_linear_params(key, in_features, out_features, quantize=32):
    """Deterministic re-implementation of CutlassLinear.__init__ / reset_parameters."""
    assert quantize == 32  # only the fp32 path is implemented
    pad_to = 256
    in_features_padded = math.ceil(in_features / pad_to) * pad_to

    k_w, k_b = jax.random.split(key)

    # kaiming_uniform_(weight, a=sqrt(5)) on a (out, in_padded) matrix:
    # gain = sqrt(2 / (1 + a^2)) = sqrt(1/3); bound = gain * sqrt(3 / fan_in) = 1/sqrt(fan_in)
    fan_in = in_features_padded
    w_bound = 1.0 / math.sqrt(fan_in)
    weight = jax.random.uniform(
        k_w, (out_features, in_features_padded),
        minval=-w_bound, maxval=w_bound, dtype=jnp.float32)

    b_bound = 1.0 / math.sqrt(fan_in)
    bias = jax.random.uniform(
        k_b, (out_features,), minval=-b_bound, maxval=b_bound, dtype=jnp.float32)

    return weight, bias, in_features_padded


# ---------------------------------- main ------------------------------------

if __name__ == "__main__":
    key = jax.random.PRNGKey(0)
    k_params, k_x = jax.random.split(key)

    batch = 2
    in_features = 100          # will be padded to 256 inside the module
    out_features = 32

    weight, bias, in_padded = init_cutlass_linear_params(
        k_params, in_features, out_features, quantize=32)

    x = jax.random.normal(k_x, (batch, in_features), dtype=jnp.float32)

    out = cutlass_linear_fp32(x, weight, bias)
    out = jax.block_until_ready(out)

    # Reference check (plain JAX) — same padded-weight semantics.
    x_pad = jnp.pad(x, ((0, 0), (0, in_padded - in_features)))
    ref = (x_pad @ weight.T + bias[None, :]).reshape(1, -1)
    assert out.shape == (1, batch * out_features)
    assert jnp.allclose(out, ref, atol=1e-5, rtol=1e-5), "mismatch vs reference"

    print("KERNEL_OK")
</pallas_src>

<mosaic_0001>
module attributes {stable_mosaic.version = 11 : i64} {
  func.func @_linear_kernel(%arg0: i32, %arg1: i32, %arg2: i32, %arg3: memref<2x128xf32, #tpu.memory_space<vmem>>, %arg4: memref<128x32xf32, #tpu.memory_space<vmem>>, %arg5: memref<1x32xf32, #tpu.memory_space<vmem>>, %arg6: memref<2x32xf32, #tpu.memory_space<vmem>>) attributes {dimension_semantics = [#tpu.dimension_semantics<parallel>, #tpu.dimension_semantics<parallel>, #tpu.dimension_semantics<arbitrary>], iteration_bounds = array<i64: 1, 1, 1>, scalar_prefetch = 0 : i64, scratch_operands = 0 : i64, tpu.core_type = #tpu.core_type<tc>, window_params = [{transform_indices = @transform_0, window_bounds = array<i64: 2, 128>}, {transform_indices = @transform_1, window_bounds = array<i64: 128, 32>}, {transform_indices = @transform_2, window_bounds = array<i64: 1, 32>}, {transform_indices = @transform_3, window_bounds = array<i64: 2, 32>}]} {
    %c0_i32 = arith.constant 0 : i32
    %0 = arith.cmpi eq, %arg2, %c0_i32 : i32
    %1 = arith.extui %0 : i1 to i32
    %c0_i32_0 = arith.constant 0 : i32
    %2 = arith.cmpi ne, %1, %c0_i32_0 : i32
    scf.if %2 {
      %c0_8 = arith.constant 0 : index
      %c0_9 = arith.constant 0 : index
      %9 = vector.load %arg5[%c0_8, %c0_9] : memref<1x32xf32, #tpu.memory_space<vmem>>, vector<1x32xf32>
      %10 = vector.shape_cast %9 : vector<1x32xf32> to vector<1x32xf32>
      %11 = vector.broadcast %10 : vector<1x32xf32> to vector<2x32xf32>
      %c0_10 = arith.constant 0 : index
      %c0_11 = arith.constant 0 : index
      %12 = vector.load %arg6[%c0_10, %c0_11] : memref<2x32xf32, #tpu.memory_space<vmem>>, vector<2x32xf32>
      tpu.vector_store %arg6[%c0_10, %c0_11], %11 {strides = array<i32>} : memref<2x32xf32, #tpu.memory_space<vmem>>, vector<2x32xf32>,
    } else {
    }
    %c0 = arith.constant 0 : index
    %c0_1 = arith.constant 0 : index
    %3 = vector.load %arg6[%c0, %c0_1] : memref<2x32xf32, #tpu.memory_space<vmem>>, vector<2x32xf32>
    %c0_2 = arith.constant 0 : index
    %c0_3 = arith.constant 0 : index
    %4 = vector.load %arg3[%c0_2, %c0_3] : memref<2x128xf32, #tpu.memory_space<vmem>>, vector<2x128xf32>
    %c0_4 = arith.constant 0 : index
    %c0_5 = arith.constant 0 : index
    %5 = vector.load %arg4[%c0_4, %c0_5] : memref<128x32xf32, #tpu.memory_space<vmem>>, vector<128x32xf32>
    %cst = arith.constant dense<0.000000e+00> : vector<2x32xf32>
    %6 = tpu.matmul %4, %5, %cst {dimension_numbers = #tpu.dot_dimension_numbers<[1], [0], [0], [1], [0, 0, 1, 1], [], []>} : vector<2x128xf32>, vector<128x32xf32>, vector<2x32xf32> -> vector<2x32xf32>
    %7 = arith.addf %3, %6 : vector<2x32xf32>
    %c0_6 = arith.constant 0 : index
    %c0_7 = arith.constant 0 : index
    %8 = vector.load %arg6[%c0_6, %c0_7] : memref<2x32xf32, #tpu.memory_space<vmem>>, vector<2x32xf32>
    tpu.vector_store %arg6[%c0_6, %c0_7], %7 {strides = array<i32>} : memref<2x32xf32, #tpu.memory_space<vmem>>, vector<2x32xf32>,
    return
  }
  func.func @transform_0(%arg0: i32, %arg1: i32, %arg2: i32) -> (i32, i32) {
    %c0_i32 = arith.constant 0 : i32
    return %arg0, %arg2 : i32, i32
  }
  func.func @transform_1(%arg0: i32, %arg1: i32, %arg2: i32) -> (i32, i32) {
    %c0_i32 = arith.constant 0 : i32
    return %arg2, %arg1 : i32, i32
  }
  func.func @transform_2(%arg0: i32, %arg1: i32, %arg2: i32) -> (i32, i32) {
    %c0_i32 = arith.constant 0 : i32
    %c0_i32_0 = arith.constant 0 : i32
    return %c0_i32, %arg1 : i32, i32
  }
  func.func @transform_3(%arg0: i32, %arg1: i32, %arg2: i32) -> (i32, i32) {
    %c0_i32 = arith.constant 0 : i32
    return %arg0, %arg1 : i32, i32
  }
}

</mosaic_0001>

<llo_original>
// kernel: tpu_custom_call.1
$region0: #{tpu_custom_call.1}
  #allocation0 [shape = 'u32[]', space=smem, size = 0x4, offset = 0x4, fixed_abs, tag = 'smem constant byte address 0x4 - core index']
  #allocation1 [shape = 'u32[144,128]{1,0:T(1,128)}', space=vmem, size = 0x12000, scoped, tag = 'internal scratch']
  %s0 = inlined_call_operand.vmem [shape: f32[2,128], index: 0, kind: input, shape index: {}]
  %s1 = inlined_call_operand.vmem [shape: f32[128,32], index: 1, kind: input, shape index: {}]
  %s2 = inlined_call_operand.vmem [shape: f32[1,32], index: 2, kind: input, shape index: {}]
  %s3 = inlined_call_operand.hbm [shape: f32[2,32], index: 3, kind: output, shape index: {}]
  %s4 = sld [smem:[#allocation0]]
  $region26: #{tpu_custom_call.1} parent=0
    _
  %s6 = ssub.s32 1, %s4
  %s7 = scalar_select 0, %s6, %s4
  $region1: #{tpu_custom_call.1} parent=0
    #allocation2 [shape = 'u8[1024]{0}', space=vmem, size = 0x400, scoped, tag = 'output window, operand 0, single buffered']
    #allocation3 [shape = 's32[1]{0}', space=sflag, size = 0x4, scoped, tag = 'scoped memory for tpu_custom_call.1']
    %8 = vsyncpa [#allocation3], 0
    // Predicated region
    $region2: #{tpu_custom_call.1} parent=1 // pred_check
      _
    $region3: #{tpu_custom_call.1} parent=1 // pred_check_branch
      %10 = sbr.rel (0) target = $region5
    $region4: #{tpu_custom_call.1} parent=1 // pred_region
      _
    $region5: #{tpu_custom_call.1} parent=1 // pred_fallthru
      _
    // Predicated region
    $region6: #{tpu_custom_call.1} parent=1 // pred_check
      _
    $region7: #{tpu_custom_call.1} parent=1 // pred_check_branch
      %12 = sbr.rel (0) target = $region9
    $region8: #{tpu_custom_call.1} parent=1 // pred_region
      _
    $region9: #{tpu_custom_call.1} parent=1 // pred_fallthru
      _
    // Predicated region
    $region10: #{tpu_custom_call.1} parent=1 // pred_check
      _
    $region11: #{tpu_custom_call.1} parent=1 // pred_check_branch
      %14 = sbr.rel (0) target = $region13
    $region12: #{tpu_custom_call.1} parent=1 // pred_region
      _
    $region13: #{tpu_custom_call.1} parent=1 // pred_fallthru
      _
    %p15 = scmp.eq.s32.totalorder 0, 0
    // Predicated region
    $region14: #{tpu_custom_call.1} parent=1 // pred_check
      %p16 = pneg %p15
    $region15: #{tpu_custom_call.1} parent=1 // pred_check_branch
      %18 = sbr.rel (%p16) target = $region17
    $region16: #{tpu_custom_call.1} parent=1 // pred_region
      %v19 = vld [vmem:[%s2] sm:$0x1]
      %v21 = vlaneseq
      %v22 = vshrl.u32 %v21, 7
      %v23 = vsub.s32 0, %v22
      %v24 = vrot.slane %v19, %v23
      %vm26 = vcmask 254976
      %27 = vst.msk [vmem:[#allocation2] sm:$0x3] %vm26, %v24
    $region17: #{tpu_custom_call.1} parent=1 // pred_fallthru
      _
    %v28 = vld [vmem:[#allocation2] sm:$0x3]
    %v29 = vld [vmem:[%s0] sm:$0x3]
    %v30 = vld [vmem:[%s1] sm:$0xff]
    %v31 = vld [vmem:[%s1 + $0x8] sm:$0xff]
    %v32 = vld [vmem:[%s1 + $0x10] sm:$0xff]
    %v33 = vld [vmem:[%s1 + $0x18] sm:$0xff]
    %v34 = vld [vmem:[%s1 + $0x20] sm:$0xff]
    %v35 = vld [vmem:[%s1 + $0x28] sm:$0xff]
    %v36 = vld [vmem:[%s1 + $0x30] sm:$0xff]
    %v37 = vld [vmem:[%s1 + $0x38] sm:$0xff]
    %v38 = vld [vmem:[%s1 + $0x40] sm:$0xff]
    %v39 = vld [vmem:[%s1 + $0x48] sm:$0xff]
    %v40 = vld [vmem:[%s1 + $0x50] sm:$0xff]
    %v41 = vld [vmem:[%s1 + $0x58] sm:$0xff]
    %v42 = vld [vmem:[%s1 + $0x60] sm:$0xff]
    %v43 = vld [vmem:[%s1 + $0x68] sm:$0xff]
    %v44 = vld [vmem:[%s1 + $0x70] sm:$0xff]
    %v45 = vld [vmem:[%s1 + $0x78] sm:$0xff]
    %46 = vmatprep.subr.mxu0 0.0
    %47 = vmatpush1.msra.mxu0 %v30
    %48 = vmatprep.subr.mxu0 0.0
    %49 = vmatpush1.msra.mxu0 %v31
    %50 = vmatprep.subr.mxu0 0.0
    %51 = vmatpush1.msra.mxu0 %v32
    %52 = vmatprep.subr.mxu0 0.0
    %53 = vmatpush1.msra.mxu0 %v33
    %54 = vmatprep.subr.mxu0 0.0
    %55 = vmatpush1.msra.mxu0 %v34
    %56 = vmatprep.subr.mxu0 0.0
    %57 = vmatpush1.msra.mxu0 %v35
    %58 = vmatprep.subr.mxu0 0.0
    %59 = vmatpush1.msra.mxu0 %v36
    %60 = vmatprep.subr.mxu0 0.0
    %61 = vmatpush1.msra.mxu0 %v37
    %62 = vmatprep.subr.mxu0 0.0
    %63 = vmatpush1.msra.mxu0 %v38
    %64 = vmatprep.subr.mxu0 0.0
    %65 = vmatpush1.msra.mxu0 %v39
    %66 = vmatprep.subr.mxu0 0.0
    %67 = vmatpush1.msra.mxu0 %v40
    %68 = vmatprep.subr.mxu0 0.0
    %69 = vmatpush1.msra.mxu0 %v41
    %70 = vmatprep.subr.mxu0 0.0
    %71 = vmatpush1.msra.mxu0 %v42
    %72 = vmatprep.subr.mxu0 0.0
    %73 = vmatpush1.msra.mxu0 %v43
    %74 = vmatprep.subr.mxu0 0.0
    %75 = vmatpush1.msra.mxu0 %v44
    %76 = vmatprep.subr.mxu0 0.0
    %77 = vmatpush1.msra.mxu0 %v45
    %78 = vmatprep.subr.mxu0 0.0
    %79 = vmatpush1.msra.mxu0 0.0
    %80 = vmatprep.subr.mxu0 0.0
    %81 = vmatpush1.msra.mxu0 0.0
    %82 = vmatprep.subr.mxu0 0.0
    %83 = vmatpush1.msra.mxu0 0.0
    %84 = vmatprep.subr.mxu0 0.0
    %85 = vmatpush1.msra.mxu0 0.0
    %86 = vmatprep.subr.mxu0 0.0
    %87 = vmatpush1.msra.mxu0 0.0
    %88 = vmatprep.subr.mxu0 0.0
    %89 = vmatpush1.msra.mxu0 0.0
    %90 = vmatprep.subr.mxu0 0.0
    %91 = vmatpush1.msra.mxu0 0.0
    %92 = vmatprep.subr.mxu0 0.0
    %93 = vmatpush1.msra.mxu0 0.0
    %94 = vmatprep.subr.mxu0 0.0
    %95 = vmatpush1.msra.mxu0 0.0
    %96 = vmatprep.subr.mxu0 0.0
    %97 = vmatpush1.msra.mxu0 0.0
    %98 = vmatprep.subr.mxu0 0.0
    %99 = vmatpush1.msra.mxu0 0.0
    %100 = vmatprep.subr.mxu0 0.0
    %101 = vmatpush1.msra.mxu0 0.0
    %102 = vmatprep.subr.mxu0 0.0
    %103 = vmatpush1.msra.mxu0 0.0
    %104 = vmatprep.subr.mxu0 0.0
    %105 = vmatpush1.msra.mxu0 0.0
    %106 = vmatprep.subr.mxu0 0.0
    %107 = vmatpush1.msra.mxu0 0.0
    %108 = vmatprep.subr.mxu0 0.0
    %109 = vmatpush1.msra.mxu0 0.0
    %110 = vmatprep.mubr.f32.mxu0 0.0
    %111 = vmatmul.mubr.f32.gmra.mrb[0].mxu0 %v29
    %v112 = vpop.f32.mrb[0].mxu0
    %v113 = vadd.f32 0.0, %v112
    %v114 = vpop.f32.mrb[0].mxu0
    %115 = vdwg.mxu0
    %v116 = vadd.f32 %v28, %v113
    %vm117 = vcmask 254976
    %118 = vst.msk [vmem:[#allocation2] sm:$0x3] %vm117, %v116
    // Predicated region
    $region18: #{tpu_custom_call.1} parent=1 // pred_check
      _
    $region19: #{tpu_custom_call.1} parent=1 // pred_check_branch
      %120 = sbr.rel (0) target = $region21
    $region20: #{tpu_custom_call.1} parent=1 // pred_region
      %s122 = ssub.s32 32, 32
      %123 = vsyncadd [#allocation3], %s122
      %s125 = sshll.u32 [#allocation2], 4
      %s126 = int_to_ptr.vmem [resolvable:$true] %s125
      %128 = dma.vmem_to_hbm [thread:$0]  %s126, 32, %s3, [#allocation3]
    $region21: #{tpu_custom_call.1} parent=1 // pred_fallthru
      _
    // Predicated region
    $region22: #{tpu_custom_call.1} parent=1 // pred_check
      _
    $region23: #{tpu_custom_call.1} parent=1 // pred_check_branch
      %130 = sbr.rel (0) target = $region25
    $region24: #{tpu_custom_call.1} parent=1 // pred_region
      %131 = dma.done [#allocation3], 32
    $region25: #{tpu_custom_call.1} parent=1 // pred_fallthru
      _
    %132 = vsyncpa [#allocation3], 1

</llo_original>
